<compile_context>
chip_gen: v6e
topology: v6e:2x2x1
jax: 0.10.0
libtpu: 0.0.40
codegen_flags: <defaults>
</compile_context>

<pallas_src>
import jax
import jax.numpy as jnp
from jax.experimental import pallas as pl
from jax.experimental.pallas import tpu as pltpu


def _round_up(x, m):
    return ((x + m - 1) // m) * m


# ----------------------------------------------------------------------------
# Kernel
# ----------------------------------------------------------------------------
def _make_fused_kernel(fd_total, k_pad):
    def kernel(shift_ref, cont_ref, w_disc_ref, w_cont_ref, out_ref):
        tile = shift_ref.shape[0]
        shifted = shift_ref[...]                   # (tile, Fd) pre-shifted, pre-masked int32

        # Multi-hot design matrix: feature f's shifted index selects a row of
        # its private block inside W_disc.  Indices of -1 (OOB / pad rows)
        # match nothing -> zero embedding.
        iota = jax.lax.broadcasted_iota(jnp.int32, (tile, k_pad), 1)
        terms = [(iota == shifted[:, f:f + 1]).astype(jnp.float32)
                 for f in range(fd_total)]
        # Balanced (tree) reduction: shorter VALU dependency chain than a
        # serial left-fold over Fd terms.
        while len(terms) > 1:
            nxt = [terms[i] + terms[i + 1] for i in range(0, len(terms) - 1, 2)]
            if len(terms) % 2:
                nxt.append(terms[-1])
            terms = nxt
        onehot = terms[0]                          # (tile, k_pad)

        # One MXU matmul -> every discrete embedding, lane-dense (tile, D_pad).
        acc = jnp.dot(onehot, w_disc_ref[...], preferred_element_type=jnp.float32)
        # Continuous Linear(1, D) + bias folded onto the MXU: cont_ref already
        # carries a trailing constant-1.0 column; w_cont_ref carries the Linear
        # rows plus one bias row, each zero outside its own D-wide output slot.
        acc = acc + jnp.dot(cont_ref[...], w_cont_ref[...],
                            preferred_element_type=jnp.float32)

        out_ref[...] = acc                         # single lane-dense store

    return kernel


# ----------------------------------------------------------------------------
# Parameter packing (host side, done once)
# ----------------------------------------------------------------------------
def build_fused_weights(params, group_order, D):
    """Pack per-group (tables_list, w, b) into block-structured fused weights.

    Returns ((w_disc, w_cont_aug), meta) where
      w_disc    : (K_pad, D_pad)        block-diagonal embedding tables
      w_cont_aug: (Fc_total+1, D_pad)   Linear rows in their output slots,
                                        last row = biases in their slots
    """
    layout = []
    disc_offsets = []
    vocab_sizes = []
    table_entries = []       # (row_start, slot, table)
    cont_entries = []        # (cont_row, slot, w_row, b_row)
    row, slot, cont_row = 0, 0, 0

    for name in group_order:
        tables_list, w, b = params[name]
        fd, fc = len(tables_list), w.shape[0]
        layout.append((fd, fc))
        for t in tables_list:
            disc_offsets.append(row)
            vocab_sizes.append(t.shape[0])
            table_entries.append((row, slot, t))
            row += t.shape[0]
            slot += 1
        for f in range(fc):
            cont_entries.append((cont_row, slot, w[f], b[f]))
            cont_row += 1
            slot += 1

    k_onehot = row
    k_pad = _round_up(max(k_onehot, 1), 128)
    fc_total = cont_row
    f_total = slot
    d_total = f_total * D
    d_pad = _round_up(d_total, 128)

    w_disc = jnp.zeros((k_pad, d_pad), jnp.float32)
    for r0, s, t in table_entries:
        w_disc = w_disc.at[r0:r0 + t.shape[0], s * D:(s + 1) * D].set(t)

    # Continuous Linear weights + bias folded into one small MXU operand.
    w_cont_aug = jnp.zeros((fc_total + 1, d_pad), jnp.float32)
    for cr, s, wr, br in cont_entries:
        w_cont_aug = w_cont_aug.at[cr, s * D:(s + 1) * D].set(wr)
        w_cont_aug = w_cont_aug.at[fc_total, s * D:(s + 1) * D].set(br)

    meta = dict(
        layout=tuple(layout),
        disc_offsets=tuple(int(o) for o in disc_offsets),
        vocab_sizes=tuple(int(v) for v in vocab_sizes),
        k_pad=int(k_pad),
        fc_total=int(fc_total),
        d_pad=int(d_pad),
        D=int(D),
    )
    return (w_disc, w_cont_aug), meta


# ----------------------------------------------------------------------------
# Forward
# ----------------------------------------------------------------------------
def _invariant_spec(shape):
    """Grid-invariant operand: single-buffer it (no point double-buffering a
    block whose index never changes).  Falls back gracefully if this jax
    version does not expose pipeline_mode / Buffered."""
    try:
        return pl.BlockSpec(shape, lambda r: (0, 0), pipeline_mode=pl.Buffered(1))
    except (TypeError, AttributeError):
        return pl.BlockSpec(shape, lambda r: (0, 0))


def make_target_embedding_forward(meta, tile_rows=512, return_slab=False):
    """tile_rows: 512-1024 is a good default on v5e/v6e for large row counts;
    cap at ~256-512 on v7x (64 MiB physical / 32 MiB scoped VMEM per TC).
    return_slab=True skips the per-group slice/reshape copies and returns the
    raw lane-dense (rows, D_pad) slab for fused consumers."""
    layout = meta["layout"]
    disc_offsets = jnp.asarray(meta["disc_offsets"], jnp.int32)
    vocab_sizes = jnp.asarray(meta["vocab_sizes"], jnp.int32)
    k_pad = meta["k_pad"]
    fc_total = meta["fc_total"]
    d_pad = meta["d_pad"]
    D = meta["D"]
    fd_total = int(disc_offsets.shape[0])

    kernel = _make_fused_kernel(fd_total, k_pad)

    @jax.jit
    def forward(qoe_disc, chonghe_disc, fufei_disc,
                qoe_cont, chonghe_cont, fufei_cont,
                w_disc, w_cont_aug):
        disc_all = jnp.concatenate(
            [x.astype(jnp.int32) for x in (qoe_disc, chonghe_disc, fufei_disc)],
            axis=-1)
        cont_all = jnp.concatenate(
            [x.astype(jnp.float32) for x in (qoe_cont, chonghe_cont, fufei_cont)],
            axis=-1)
        B, S, _ = disc_all.shape
        rows = B * S
        disc2 = disc_all.reshape(rows, fd_total)
        cont2 = cont_all.reshape(rows, fc_total)

        # Hoisted, vectorized index shift (+1 + table offset) and OOB masking:
        # any index outside its own table's rows becomes -1 (-> zero embedding)
        # instead of silently hitting a neighboring feature's block.
        shifted = disc2 + 1 + disc_offsets[None, :]
        lo = disc_offsets[None, :]
        hi = (disc_offsets + vocab_sizes)[None, :]
        shifted = jnp.where((shifted >= lo) & (shifted < hi), shifted, -1)

        # Constant-1.0 column folds the Linear bias into the small MXU matmul.
        cont_aug = jnp.concatenate(
            [cont2, jnp.ones((rows, 1), jnp.float32)], axis=1)

        # Row tiling: collapse B*S, big tiles when the problem is big enough.
        tile = tile_rows if rows >= tile_rows else _round_up(rows, 8)
        rows_pad = _round_up(rows, tile)
        if rows_pad != rows:
            # pad rows select nothing and add nothing -> exact zeros out.
            shifted = jnp.pad(shifted, ((0, rows_pad - rows), (0, 0)),
                              constant_values=-1)
            cont_aug = jnp.pad(cont_aug, ((0, rows_pad - rows), (0, 0)))

        out = pl.pallas_call(
            kernel,
            out_shape=jax.ShapeDtypeStruct((rows_pad, d_pad), jnp.float32),
            grid=(rows_pad // tile,),
            in_specs=[
                pl.BlockSpec((tile, fd_total), lambda r: (r, 0)),
                pl.BlockSpec((tile, fc_total + 1), lambda r: (r, 0)),
                _invariant_spec((k_pad, d_pad)),
                _invariant_spec((fc_total + 1, d_pad)),
            ],
            out_specs=pl.BlockSpec((tile, d_pad), lambda r: (r, 0)),
            compiler_params=pltpu.CompilerParams(
                dimension_semantics=("parallel",)),
        )(shifted, cont_aug, w_disc, w_cont_aug)

        if rows_pad != rows:
            out = out[:rows]
        if return_slab:
            # Lane-dense slab: consumers slice columns [slot*D, (slot+1)*D)
            # themselves (avoids materializing per-group copies here).
            return out

        # PyTorch layout (B, S, F_g, D) per group; under jit these slices
        # typically fuse into the consumer rather than materializing.
        results = []
        col = 0
        for fd_g, fc_g in layout:
            fg = fd_g + fc_g
            results.append(out[:, col:col + fg * D].reshape(B, S, fg, D))
            col += fg * D
        return tuple(results)

    return forward


# ----------------------------------------------------------------------------
# Synthetic parameters / reference
# ----------------------------------------------------------------------------
def make_group_params(key, vocab_sizes, n_cont, D):
    """Per-feature embedding tables (vocab = num_categories + 2 rows, so the +1
    shift in forward is always in range) and Linear(1, D) weights."""
    keys = jax.random.split(key, len(vocab_sizes) + 2)
    tables = [jax.random.normal(keys[f], (v + 2, D), dtype=jnp.float32) * 0.05
              for f, v in enumerate(vocab_sizes)]
    w = jax.random.normal(keys[-2], (n_cont, D), dtype=jnp.float32) * 0.05
    b = jax.random.normal(keys[-1], (n_cont, D), dtype=jnp.float32) * 0.05
    return tables, w, b


def target_group_reference(disc, cont, tables, w, b):
    """Pure-JAX reference matching the PyTorch forward for one group."""
    emb_d = jnp.stack(
        [tables[f][disc[:, :, f] + 1] for f in range(len(tables))], axis=-2)
    emb_c = jnp.stack(
        [cont[:, :, f:f + 1].astype(jnp.float32) * w[f] + b[f]
         for f in range(w.shape[0])], axis=-2)
    return jnp.concatenate([emb_d, emb_c], axis=2)


# ----------------------------------------------------------------------------
# Main
# ----------------------------------------------------------------------------
if __name__ == "__main__":
    key = jax.random.PRNGKey(0)

    B, S, D = 2, 8, 8  # batch, history length, embedding dim

    group_order = ("QOE", "CHONGHE", "FUFEI")
    group_cfg = {
        "QOE":     {"disc_vocabs": [5, 7, 6],    "n_cont": 2},
        "CHONGHE": {"disc_vocabs": [4, 9],       "n_cont": 3},
        "FUFEI":   {"disc_vocabs": [6, 3, 8, 5], "n_cont": 1},
    }

    params = {}
    inputs = {}
    k_param, k_data = jax.random.split(key)
    kps = jax.random.split(k_param, 3)
    kds = jax.random.split(k_data, 6)
    for gi, name in enumerate(group_order):
        cfg = group_cfg[name]
        tables, w, b = make_group_params(kps[gi], cfg["disc_vocabs"], cfg["n_cont"], D)
        params[name] = (tables, w, b)
        Fd = len(cfg["disc_vocabs"])
        Fc = cfg["n_cont"]
        # discrete indices may contain -1 (missing); forward shifts by +1
        disc = jax.random.randint(
            kds[2 * gi], (B, S, Fd), minval=-1,
            maxval=min(cfg["disc_vocabs"])).astype(jnp.int32)
        cont = jax.random.normal(kds[2 * gi + 1], (B, S, Fc), dtype=jnp.float32)
        inputs[name] = (disc, cont)

    (w_disc, w_cont_aug), meta = build_fused_weights(params, group_order, D)
    forward = make_target_embedding_forward(meta)

    outs = forward(inputs["QOE"][0], inputs["CHONGHE"][0], inputs["FUFEI"][0],
                   inputs["QOE"][1], inputs["CHONGHE"][1], inputs["FUFEI"][1],
                   w_disc, w_cont_aug)
    outs = jax.block_until_ready(outs)

    # correctness check against a pure-JAX reference of the PyTorch forward
    ok = True
    for name, out in zip(group_order, outs):
        disc, cont = inputs[name]
        tables, w, b = params[name]
        ref = target_group_reference(disc, cont, tables, w, b)
        Fd = disc.shape[-1]
        Fc = cont.shape[-1]
        if out.shape != (B, S, Fd + Fc, D):
            ok = False
        if not jnp.allclose(out, ref, atol=1e-5, rtol=1e-5):
            ok = False

    if ok:
        print("KERNEL_OK")
    else:
        print("KERNEL_MISMATCH")
</pallas_src>

<mosaic_0001>
module attributes {stable_mosaic.version = 11 : i64} {
  func.func @kernel(%arg0: i32, %arg1: memref<16x9xi32, #tpu.memory_space<vmem>>, %arg2: memref<16x7xf32, #tpu.memory_space<vmem>>, %arg3: memref<128x128xf32, #tpu.memory_space<vmem>>, %arg4: memref<7x128xf32, #tpu.memory_space<vmem>>, %arg5: memref<16x128xf32, #tpu.memory_space<vmem>>) attributes {dimension_semantics = [#tpu.dimension_semantics<parallel>], iteration_bounds = array<i64: 1>, scalar_prefetch = 0 : i64, scratch_operands = 0 : i64, tpu.core_type = #tpu.core_type<tc>, window_params = [{transform_indices = @transform_0, window_bounds = array<i64: 16, 9>}, {transform_indices = @transform_1, window_bounds = array<i64: 16, 7>}, {pipeline_mode = #tpu.pipeline_mode<synchronous>, transform_indices = @transform_2, window_bounds = array<i64: 128, 128>}, {pipeline_mode = #tpu.pipeline_mode<synchronous>, transform_indices = @transform_3, window_bounds = array<i64: 7, 128>}, {transform_indices = @transform_4, window_bounds = array<i64: 16, 128>}]} {
    %c0 = arith.constant 0 : index
    %c0_0 = arith.constant 0 : index
    %0 = vector.load %arg1[%c0, %c0_0] : memref<16x9xi32, #tpu.memory_space<vmem>>, vector<16x9xi32>
    %1 = tpu.iota {dimensions = array<i32: 1>} : vector<16x128xi32>
    %2 = vector.extract_strided_slice %0 {offsets = [0, 0], sizes = [16, 1], strides = [1, 1]} : vector<16x9xi32> to vector<16x1xi32>
    %3 = vector.broadcast %2 : vector<16x1xi32> to vector<16x128xi32>
    %4 = arith.cmpi eq, %1, %3 : vector<16x128xi32>
    %5 = arith.extui %4 : vector<16x128xi1> to vector<16x128xi32>
    %6 = arith.sitofp %5 : vector<16x128xi32> to vector<16x128xf32>
    %7 = vector.extract_strided_slice %0 {offsets = [0, 1], sizes = [16, 1], strides = [1, 1]} : vector<16x9xi32> to vector<16x1xi32>
    %8 = vector.broadcast %7 : vector<16x1xi32> to vector<16x128xi32>
    %9 = arith.cmpi eq, %1, %8 : vector<16x128xi32>
    %10 = arith.extui %9 : vector<16x128xi1> to vector<16x128xi32>
    %11 = arith.sitofp %10 : vector<16x128xi32> to vector<16x128xf32>
    %12 = vector.extract_strided_slice %0 {offsets = [0, 2], sizes = [16, 1], strides = [1, 1]} : vector<16x9xi32> to vector<16x1xi32>
    %13 = vector.broadcast %12 : vector<16x1xi32> to vector<16x128xi32>
    %14 = arith.cmpi eq, %1, %13 : vector<16x128xi32>
    %15 = arith.extui %14 : vector<16x128xi1> to vector<16x128xi32>
    %16 = arith.sitofp %15 : vector<16x128xi32> to vector<16x128xf32>
    %17 = vector.extract_strided_slice %0 {offsets = [0, 3], sizes = [16, 1], strides = [1, 1]} : vector<16x9xi32> to vector<16x1xi32>
    %18 = vector.broadcast %17 : vector<16x1xi32> to vector<16x128xi32>
    %19 = arith.cmpi eq, %1, %18 : vector<16x128xi32>
    %20 = arith.extui %19 : vector<16x128xi1> to vector<16x128xi32>
    %21 = arith.sitofp %20 : vector<16x128xi32> to vector<16x128xf32>
    %22 = vector.extract_strided_slice %0 {offsets = [0, 4], sizes = [16, 1], strides = [1, 1]} : vector<16x9xi32> to vector<16x1xi32>
    %23 = vector.broadcast %22 : vector<16x1xi32> to vector<16x128xi32>
    %24 = arith.cmpi eq, %1, %23 : vector<16x128xi32>
    %25 = arith.extui %24 : vector<16x128xi1> to vector<16x128xi32>
    %26 = arith.sitofp %25 : vector<16x128xi32> to vector<16x128xf32>
    %27 = vector.extract_strided_slice %0 {offsets = [0, 5], sizes = [16, 1], strides = [1, 1]} : vector<16x9xi32> to vector<16x1xi32>
    %28 = vector.broadcast %27 : vector<16x1xi32> to vector<16x128xi32>
    %29 = arith.cmpi eq, %1, %28 : vector<16x128xi32>
    %30 = arith.extui %29 : vector<16x128xi1> to vector<16x128xi32>
    %31 = arith.sitofp %30 : vector<16x128xi32> to vector<16x128xf32>
    %32 = vector.extract_strided_slice %0 {offsets = [0, 6], sizes = [16, 1], strides = [1, 1]} : vector<16x9xi32> to vector<16x1xi32>
    %33 = vector.broadcast %32 : vector<16x1xi32> to vector<16x128xi32>
    %34 = arith.cmpi eq, %1, %33 : vector<16x128xi32>
    %35 = arith.extui %34 : vector<16x128xi1> to vector<16x128xi32>
    %36 = arith.sitofp %35 : vector<16x128xi32> to vector<16x128xf32>
    %37 = vector.extract_strided_slice %0 {offsets = [0, 7], sizes = [16, 1], strides = [1, 1]} : vector<16x9xi32> to vector<16x1xi32>
    %38 = vector.broadcast %37 : vector<16x1xi32> to vector<16x128xi32>
    %39 = arith.cmpi eq, %1, %38 : vector<16x128xi32>
    %40 = arith.extui %39 : vector<16x128xi1> to vector<16x128xi32>
    %41 = arith.sitofp %40 : vector<16x128xi32> to vector<16x128xf32>
    %42 = vector.extract_strided_slice %0 {offsets = [0, 8], sizes = [16, 1], strides = [1, 1]} : vector<16x9xi32> to vector<16x1xi32>
    %43 = vector.broadcast %42 : vector<16x1xi32> to vector<16x128xi32>
    %44 = arith.cmpi eq, %1, %43 : vector<16x128xi32>
    %45 = arith.extui %44 : vector<16x128xi1> to vector<16x128xi32>
    %46 = arith.sitofp %45 : vector<16x128xi32> to vector<16x128xf32>
    %47 = arith.addf %6, %11 : vector<16x128xf32>
    %48 = arith.addf %16, %21 : vector<16x128xf32>
    %49 = arith.addf %26, %31 : vector<16x128xf32>
    %50 = arith.addf %36, %41 : vector<16x128xf32>
    %51 = arith.addf %47, %48 : vector<16x128xf32>
    %52 = arith.addf %49, %50 : vector<16x128xf32>
    %53 = arith.addf %51, %52 : vector<16x128xf32>
    %54 = arith.addf %53, %46 : vector<16x128xf32>
    %c0_1 = arith.constant 0 : index
    %c0_2 = arith.constant 0 : index
    %55 = vector.load %arg3[%c0_1, %c0_2] : memref<128x128xf32, #tpu.memory_space<vmem>>, vector<128x128xf32>
    %cst = arith.constant dense<0.000000e+00> : vector<16x128xf32>
    %56 = tpu.matmul %54, %55, %cst {dimension_numbers = #tpu.dot_dimension_numbers<[1], [0], [0], [1], [0, 0, 1, 1], [], []>} : vector<16x128xf32>, vector<128x128xf32>, vector<16x128xf32> -> vector<16x128xf32>
    %c0_3 = arith.constant 0 : index
    %c0_4 = arith.constant 0 : index
    %57 = vector.load %arg2[%c0_3, %c0_4] : memref<16x7xf32, #tpu.memory_space<vmem>>, vector<16x7xf32>
    %c0_5 = arith.constant 0 : index
    %c0_6 = arith.constant 0 : index
    %58 = vector.load %arg4[%c0_5, %c0_6] : memref<7x128xf32, #tpu.memory_space<vmem>>, vector<7x128xf32>
    %cst_7 = arith.constant dense<0.000000e+00> : vector<16x128xf32>
    %59 = tpu.matmul %57, %58, %cst_7 {dimension_numbers = #tpu.dot_dimension_numbers<[1], [0], [0], [1], [0, 0, 1, 1], [], []>} : vector<16x7xf32>, vector<7x128xf32>, vector<16x128xf32> -> vector<16x128xf32>
    %60 = arith.addf %56, %59 : vector<16x128xf32>
    %c0_8 = arith.constant 0 : index
    %c0_9 = arith.constant 0 : index
    %61 = vector.load %arg5[%c0_8, %c0_9] : memref<16x128xf32, #tpu.memory_space<vmem>>, vector<16x128xf32>
    tpu.vector_store %arg5[%c0_8, %c0_9], %60 {strides = array<i32>} : memref<16x128xf32, #tpu.memory_space<vmem>>, vector<16x128xf32>,
    return
  }
  func.func @transform_0(%arg0: i32) -> (i32, i32) {
    %c0_i32 = arith.constant 0 : i32
    %c0_i32_0 = arith.constant 0 : i32
    return %arg0, %c0_i32 : i32, i32
  }
  func.func @transform_1(%arg0: i32) -> (i32, i32) {
    %c0_i32 = arith.constant 0 : i32
    %c0_i32_0 = arith.constant 0 : i32
    return %arg0, %c0_i32 : i32, i32
  }
  func.func @transform_2(%arg0: i32) -> (i32, i32) {
    %c0_i32 = arith.constant 0 : i32
    %c0_i32_0 = arith.constant 0 : i32
    %c0_i32_1 = arith.constant 0 : i32
    return %c0_i32, %c0_i32_0 : i32, i32
  }
  func.func @transform_3(%arg0: i32) -> (i32, i32) {
    %c0_i32 = arith.constant 0 : i32
    %c0_i32_0 = arith.constant 0 : i32
    %c0_i32_1 = arith.constant 0 : i32
    return %c0_i32, %c0_i32_0 : i32, i32
  }
  func.func @transform_4(%arg0: i32) -> (i32, i32) {
    %c0_i32 = arith.constant 0 : i32
    %c0_i32_0 = arith.constant 0 : i32
    return %arg0, %c0_i32 : i32, i32
  }
}

</mosaic_0001>

<llo_original>
// kernel: forward.1
$region0: #{forward.1}
  #allocation0 [shape = 'u32[]', space=smem, size = 0x4, offset = 0x4, fixed_abs, tag = 'smem constant byte address 0x4 - core index']
  #allocation1 [shape = 'u32[144,128]{1,0:T(1,128)}', space=vmem, size = 0x12000, scoped, tag = 'internal scratch']
  %s0 = inlined_call_operand.vmem [shape: s32[16,9], index: 0, kind: input, shape index: {}]
  %s1 = inlined_call_operand.vmem [shape: f32[16,7], index: 1, kind: input, shape index: {}]
  %s2 = inlined_call_operand.vmem [shape: f32[128,128], index: 2, kind: input, shape index: {}]
  %s3 = inlined_call_operand.vmem [shape: f32[7,128], index: 3, kind: input, shape index: {}]
  %s4 = inlined_call_operand.vmem [shape: f32[16,128], index: 4, kind: output, shape index: {}]
  %s5 = sld [smem:[#allocation0]]
  $region26: #{forward.1} parent=0
    _
  %s7 = ssub.s32 1, %s5
  %s8 = scalar_select 0, %s7, %s5
  // Predicated region
  $region2: #{forward.1} parent=0 // pred_check
    _
  $region3: #{forward.1} parent=0 // pred_check_branch
    %10 = sbr.rel (0) target = $region5
  $region4: #{forward.1} parent=0 // pred_region
    _
  $region5: #{forward.1} parent=0 // pred_fallthru
    _
  // Predicated region
  $region6: #{forward.1} parent=0 // pred_check
    _
  $region7: #{forward.1} parent=0 // pred_check_branch
    %12 = sbr.rel (0) target = $region9
  $region8: #{forward.1} parent=0 // pred_region
    _
  $region9: #{forward.1} parent=0 // pred_fallthru
    _
  // Predicated region
  $region10: #{forward.1} parent=0 // pred_check
    _
  $region11: #{forward.1} parent=0 // pred_check_branch
    %14 = sbr.rel (0) target = $region13
  $region12: #{forward.1} parent=0 // pred_region
    _
  $region13: #{forward.1} parent=0 // pred_fallthru
    _
  // Predicated region
  $region14: #{forward.1} parent=0 // pred_check
    _
  $region15: #{forward.1} parent=0 // pred_check_branch
    %16 = sbr.rel (0) target = $region17
  $region16: #{forward.1} parent=0 // pred_region
    _
  $region17: #{forward.1} parent=0 // pred_fallthru
    _
  %v17 = vld [vmem:[%s0] sm:$0xff]
  %v18 = vld [vmem:[%s0 + $0x8] sm:$0xff]
  %v19 = vlaneseq
  %v20 = vand.u32 %v19, 127
  %21 = vset.pattern.permute.xlu0 0
  %22 = vperm.xlu0 %21, %v17
  %v23 = vpop.permute.xlu0 %22
  %24 = vset.pattern.permute.xlu0 0
  %25 = vperm.xlu0 %24, %v18
  %v26 = vpop.permute.xlu0 %25
  %vm27 = vcmp.eq.s32.totalorder %v20, %v23
  %vm28 = vcmp.eq.s32.totalorder %v20, %v26
  %v29 = vsel %vm27, 1, 0
  %v30 = vsel %vm28, 1, 0
  %v31 = vcvt.s32.f32 %v29
  %v32 = vcvt.s32.f32 %v30
  %33 = vset.pattern.permute.xlu0 1
  %34 = vperm.xlu0 %33, %v17
  %v35 = vpop.permute.xlu0 %34
  %36 = vset.pattern.permute.xlu0 1
  %37 = vperm.xlu0 %36, %v18
  %v38 = vpop.permute.xlu0 %37
  %vm39 = vcmp.eq.s32.totalorder %v20, %v35
  %vm40 = vcmp.eq.s32.totalorder %v20, %v38
  %v41 = vsel %vm39, 1, 0
  %v42 = vsel %vm40, 1, 0
  %v43 = vcvt.s32.f32 %v41
  %v44 = vcvt.s32.f32 %v42
  %45 = vset.pattern.permute.xlu0 2
  %46 = vperm.xlu0 %45, %v17
  %v47 = vpop.permute.xlu0 %46
  %48 = vset.pattern.permute.xlu0 2
  %49 = vperm.xlu0 %48, %v18
  %v50 = vpop.permute.xlu0 %49
  %vm51 = vcmp.eq.s32.totalorder %v20, %v47
  %vm52 = vcmp.eq.s32.totalorder %v20, %v50
  %v53 = vsel %vm51, 1, 0
  %v54 = vsel %vm52, 1, 0
  %v55 = vcvt.s32.f32 %v53
  %v56 = vcvt.s32.f32 %v54
  %57 = vset.pattern.permute.xlu0 3
  %58 = vperm.xlu0 %57, %v17
  %v59 = vpop.permute.xlu0 %58
  %60 = vset.pattern.permute.xlu0 3
  %61 = vperm.xlu0 %60, %v18
  %v62 = vpop.permute.xlu0 %61
  %vm63 = vcmp.eq.s32.totalorder %v20, %v59
  %vm64 = vcmp.eq.s32.totalorder %v20, %v62
  %v65 = vsel %vm63, 1, 0
  %v66 = vsel %vm64, 1, 0
  %v67 = vcvt.s32.f32 %v65
  %v68 = vcvt.s32.f32 %v66
  %69 = vset.pattern.permute.xlu0 4
  %70 = vperm.xlu0 %69, %v17
  %v71 = vpop.permute.xlu0 %70
  %72 = vset.pattern.permute.xlu0 4
  %73 = vperm.xlu0 %72, %v18
  %v74 = vpop.permute.xlu0 %73
  %vm75 = vcmp.eq.s32.totalorder %v20, %v71
  %vm76 = vcmp.eq.s32.totalorder %v20, %v74
  %v77 = vsel %vm75, 1, 0
  %v78 = vsel %vm76, 1, 0
  %v79 = vcvt.s32.f32 %v77
  %v80 = vcvt.s32.f32 %v78
  %81 = vset.pattern.permute.xlu0 5
  %82 = vperm.xlu0 %81, %v17
  %v83 = vpop.permute.xlu0 %82
  %84 = vset.pattern.permute.xlu0 5
  %85 = vperm.xlu0 %84, %v18
  %v86 = vpop.permute.xlu0 %85
  %vm87 = vcmp.eq.s32.totalorder %v20, %v83
  %vm88 = vcmp.eq.s32.totalorder %v20, %v86
  %v89 = vsel %vm87, 1, 0
  %v90 = vsel %vm88, 1, 0
  %v91 = vcvt.s32.f32 %v89
  %v92 = vcvt.s32.f32 %v90
  %93 = vset.pattern.permute.xlu0 6
  %94 = vperm.xlu0 %93, %v17
  %v95 = vpop.permute.xlu0 %94
  %96 = vset.pattern.permute.xlu0 6
  %97 = vperm.xlu0 %96, %v18
  %v98 = vpop.permute.xlu0 %97
  %vm99 = vcmp.eq.s32.totalorder %v20, %v95
  %vm100 = vcmp.eq.s32.totalorder %v20, %v98
  %v101 = vsel %vm99, 1, 0
  %v102 = vsel %vm100, 1, 0
  %v103 = vcvt.s32.f32 %v101
  %v104 = vcvt.s32.f32 %v102
  %105 = vset.pattern.permute.xlu0 7
  %106 = vperm.xlu0 %105, %v17
  %v107 = vpop.permute.xlu0 %106
  %108 = vset.pattern.permute.xlu0 7
  %109 = vperm.xlu0 %108, %v18
  %v110 = vpop.permute.xlu0 %109
  %vm111 = vcmp.eq.s32.totalorder %v20, %v107
  %vm112 = vcmp.eq.s32.totalorder %v20, %v110
  %v113 = vsel %vm111, 1, 0
  %v114 = vsel %vm112, 1, 0
  %v115 = vcvt.s32.f32 %v113
  %v116 = vcvt.s32.f32 %v114
  %117 = vset.pattern.permute.xlu0 8
  %118 = vperm.xlu0 %117, %v17
  %v119 = vpop.permute.xlu0 %118
  %120 = vset.pattern.permute.xlu0 8
  %121 = vperm.xlu0 %120, %v18
  %v122 = vpop.permute.xlu0 %121
  %vm123 = vcmp.eq.s32.totalorder %v20, %v119
  %vm124 = vcmp.eq.s32.totalorder %v20, %v122
  %v125 = vsel %vm123, 1, 0
  %v126 = vsel %vm124, 1, 0
  %v127 = vcvt.s32.f32 %v125
  %v128 = vcvt.s32.f32 %v126
  %v129 = vadd.f32 %v31, %v43
  %v130 = vadd.f32 %v32, %v44
  %v131 = vadd.f32 %v55, %v67
  %v132 = vadd.f32 %v56, %v68
  %v133 = vadd.f32 %v79, %v91
  %v134 = vadd.f32 %v80, %v92
  %v135 = vadd.f32 %v103, %v115
  %v136 = vadd.f32 %v104, %v116
  %v137 = vadd.f32 %v129, %v131
  %v138 = vadd.f32 %v130, %v132
  %v139 = vadd.f32 %v133, %v135
  %v140 = vadd.f32 %v134, %v136
  %v141 = vadd.f32 %v137, %v139
  %v142 = vadd.f32 %v138, %v140
  %v143 = vadd.f32 %v141, %v127
  %v144 = vadd.f32 %v142, %v128
  %v145 = vld [vmem:[%s2] sm:$0xff]
  %v146 = vld [vmem:[%s2 + $0x8] sm:$0xff]
  %v147 = vld [vmem:[%s2 + $0x10] sm:$0xff]
  %v148 = vld [vmem:[%s2 + $0x18] sm:$0xff]
  %v149 = vld [vmem:[%s2 + $0x20] sm:$0xff]
  %v150 = vld [vmem:[%s2 + $0x28] sm:$0xff]
  %v151 = vld [vmem:[%s2 + $0x30] sm:$0xff]
  %v152 = vld [vmem:[%s2 + $0x38] sm:$0xff]
  %v153 = vld [vmem:[%s2 + $0x40] sm:$0xff]
  %v154 = vld [vmem:[%s2 + $0x48] sm:$0xff]
  %v155 = vld [vmem:[%s2 + $0x50] sm:$0xff]
  %v156 = vld [vmem:[%s2 + $0x58] sm:$0xff]
  %v157 = vld [vmem:[%s2 + $0x60] sm:$0xff]
  %v158 = vld [vmem:[%s2 + $0x68] sm:$0xff]
  %v159 = vld [vmem:[%s2 + $0x70] sm:$0xff]
  %v160 = vld [vmem:[%s2 + $0x78] sm:$0xff]
  %v161 = vld [vmem:[%s1] sm:$0xff]
  %v162 = vld [vmem:[%s1 + $0x8] sm:$0xff]
  %v163 = vld [vmem:[%s3] sm:$0x7f]
  %vm164 = vcmask 56320
  %v166 = vsel %vm164, %v161, 0
  %v169 = vsel %vm164, %v162, 0
  %vm171 = vcmask 1046528
  %v173 = vsel %vm171, %v163, 0
  %175 = vmatprep.subr.mxu0 0.0
  %176 = vmatpush1.msra.mxu0 0.0
  %177 = vmatprep.subr.mxu0 0.0
  %178 = vmatpush1.msra.mxu0 0.0
  %179 = vmatprep.subr.mxu0 0.0
  %180 = vmatpush1.msra.mxu0 0.0
  %181 = vmatprep.subr.mxu0 0.0
  %182 = vmatpush1.msra.mxu0 0.0
  %183 = vmatprep.subr.mxu0 0.0
  %184 = vmatpush1.msra.mxu0 0.0
  %185 = vmatprep.subr.mxu0 0.0
  %186 = vmatpush1.msra.mxu0 0.0
  %187 = vmatprep.subr.mxu0 0.0
  %188 = vmatpush1.msra.mxu0 0.0
  %189 = vmatprep.subr.mxu0 0.0
  %190 = vmatpush1.msra.mxu0 0.0
  %191 = vmatprep.subr.mxu0 0.0
  %192 = vmatpush1.msra.mxu0 0.0
  %193 = vmatprep.subr.mxu0 0.0
  %194 = vmatpush1.msra.mxu0 0.0
  %195 = vmatprep.subr.mxu0 0.0
  %196 = vmatpush1.msra.mxu0 0.0
  %197 = vmatprep.subr.mxu0 0.0
  %198 = vmatpush1.msra.mxu0 0.0
  %199 = vmatprep.subr.mxu0 0.0
  %200 = vmatpush1.msra.mxu0 0.0
  %201 = vmatprep.subr.mxu0 0.0
  %202 = vmatpush1.msra.mxu0 0.0
  %203 = vmatprep.subr.mxu0 0.0
  %204 = vmatpush1.msra.mxu0 0.0
  %205 = vmatprep.subr.mxu0 0.0
  %206 = vmatpush1.msra.mxu0 %v173
  %207 = vmatprep.subr.mxu0 0.0
  %208 = vmatpush2.msra.mxu0 0.0
  %209 = vmatprep.subr.mxu0 0.0
  %210 = vmatpush2.msra.mxu0 0.0
  %211 = vmatprep.subr.mxu0 0.0
  %212 = vmatpush2.msra.mxu0 0.0
  %213 = vmatprep.subr.mxu0 0.0
  %214 = vmatpush2.msra.mxu0 0.0
  %215 = vmatprep.subr.mxu0 0.0
  %216 = vmatpush2.msra.mxu0 0.0
  %217 = vmatprep.subr.mxu0 0.0
  %218 = vmatpush2.msra.mxu0 0.0
  %219 = vmatprep.subr.mxu0 0.0
  %220 = vmatpush2.msra.mxu0 0.0
  %221 = vmatprep.subr.mxu0 0.0
  %222 = vmatpush2.msra.mxu0 0.0
  %223 = vmatprep.subr.mxu0 0.0
  %224 = vmatpush2.msra.mxu0 0.0
  %225 = vmatprep.subr.mxu0 0.0
  %226 = vmatpush2.msra.mxu0 0.0
  %227 = vmatprep.subr.mxu0 0.0
  %228 = vmatpush2.msra.mxu0 0.0
  %229 = vmatprep.subr.mxu0 0.0
  %230 = vmatpush2.msra.mxu0 0.0
  %231 = vmatprep.subr.mxu0 0.0
  %232 = vmatpush2.msra.mxu0 0.0
  %233 = vmatprep.subr.mxu0 0.0
  %234 = vmatpush2.msra.mxu0 0.0
  %235 = vmatprep.subr.mxu0 0.0
  %236 = vmatpush2.msra.mxu0 0.0
  %237 = vmatprep.subr.mxu0 0.0
  %238 = vmatpush2.msra.mxu0 0.0
  %239 = vmatprep.mubr.f32.mxu0 0.0
  %240 = vmatmul.mubr.f32.gmra.mxu0 %v166
  %v241 = vpop.f32.mrf.mxu0
  %v242 = vadd.f32 0.0, %v241
  %v243 = vpop.f32.mrf.mxu0
  %244 = vmatprep.mubr.f32.mxu0 0.0
  %245 = vmatmul.mubr.f32.gmra.mxu0 %v169
  %v246 = vpop.f32.mrf.mxu0
  %v247 = vadd.f32 0.0, %v246
  %v248 = vpop.f32.mrf.mxu0
  %249 = vdwg.mxu0
  %250 = vmatprep.subr.mxu0 0.0
  %251 = vmatpush1.msra.mxu0 %v160
  %252 = vmatprep.subr.mxu0 0.0
  %253 = vmatpush1.msra.mxu0 %v159
  %254 = vmatprep.subr.mxu0 0.0
  %255 = vmatpush1.msra.mxu0 %v158
  %256 = vmatprep.subr.mxu0 0.0
  %257 = vmatpush1.msra.mxu0 %v157
  %258 = vmatprep.subr.mxu0 0.0
  %259 = vmatpush1.msra.mxu0 %v156
  %260 = vmatprep.subr.mxu0 0.0
  %261 = vmatpush1.msra.mxu0 %v155
  %262 = vmatprep.subr.mxu0 0.0
  %263 = vmatpush1.msra.mxu0 %v154
  %264 = vmatprep.subr.mxu0 0.0
  %265 = vmatpush1.msra.mxu0 %v153
  %266 = vmatprep.subr.mxu0 0.0
  %267 = vmatpush1.msra.mxu0 %v152
  %268 = vmatprep.subr.mxu0 0.0
  %269 = vmatpush1.msra.mxu0 %v151
  %270 = vmatprep.subr.mxu0 0.0
  %271 = vmatpush1.msra.mxu0 %v150
  %272 = vmatprep.subr.mxu0 0.0
  %273 = vmatpush1.msra.mxu0 %v149
  %274 = vmatprep.subr.mxu0 0.0
  %275 = vmatpush1.msra.mxu0 %v148
  %276 = vmatprep.subr.mxu0 0.0
  %277 = vmatpush1.msra.mxu0 %v147
  %278 = vmatprep.subr.mxu0 0.0
  %279 = vmatpush1.msra.mxu0 %v146
  %280 = vmatprep.subr.mxu0 0.0
  %281 = vmatpush1.msra.mxu0 %v145
  %282 = vmatprep.subr.mxu0 0.0
  %283 = vmatpush2.msra.mxu0 0.0
  %284 = vmatprep.subr.mxu0 0.0
  %285 = vmatpush2.msra.mxu0 0.0
  %286 = vmatprep.subr.mxu0 0.0
  %287 = vmatpush2.msra.mxu0 0.0
  %288 = vmatprep.subr.mxu0 0.0
  %289 = vmatpush2.msra.mxu0 0.0
  %290 = vmatprep.subr.mxu0 0.0
  %291 = vmatpush2.msra.mxu0 0.0
  %292 = vmatprep.subr.mxu0 0.0
  %293 = vmatpush2.msra.mxu0 0.0
  %294 = vmatprep.subr.mxu0 0.0
  %295 = vmatpush2.msra.mxu0 0.0
  %296 = vmatprep.subr.mxu0 0.0
  %297 = vmatpush2.msra.mxu0 0.0
  %298 = vmatprep.subr.mxu0 0.0
  %299 = vmatpush2.msra.mxu0 0.0
  %300 = vmatprep.subr.mxu0 0.0
  %301 = vmatpush2.msra.mxu0 0.0
  %302 = vmatprep.subr.mxu0 0.0
  %303 = vmatpush2.msra.mxu0 0.0
  %304 = vmatprep.subr.mxu0 0.0
  %305 = vmatpush2.msra.mxu0 0.0
  %306 = vmatprep.subr.mxu0 0.0
  %307 = vmatpush2.msra.mxu0 0.0
  %308 = vmatprep.subr.mxu0 0.0
  %309 = vmatpush2.msra.mxu0 0.0
  %310 = vmatprep.subr.mxu0 0.0
  %311 = vmatpush2.msra.mxu0 0.0
  %312 = vmatprep.subr.mxu0 0.0
  %313 = vmatpush2.msra.mxu0 0.0
  %314 = vmatprep.mubr.f32.mxu0 0.0
  %315 = vmatmul.mubr.f32.gmra.mxu0 %v143
  %v316 = vpop.f32.mrf.mxu0
  %v317 = vadd.f32 %v242, %v316
  %v318 = vpop.f32.mrf.mxu0
  %319 = vmatprep.mubr.f32.mxu0 0.0
  %320 = vmatmul.mubr.f32.gmra.mxu0 %v144
  %v321 = vpop.f32.mrf.mxu0
  %v322 = vadd.f32 %v247, %v321
  %v323 = vpop.f32.mrf.mxu0
  %324 = vdwg.mxu0
  %325 = vst [vmem:[%s4] sm:$0xff] %v317
  %326 = vst [vmem:[%s4 + $0x8] sm:$0xff] %v322
  // Predicated region
  $region18: #{forward.1} parent=0 // pred_check
    _
  $region19: #{forward.1} parent=0 // pred_check_branch
    %328 = sbr.rel (0) target = $region21
  $region20: #{forward.1} parent=0 // pred_region
    _
  $region21: #{forward.1} parent=0 // pred_fallthru
    _
  // Predicated region
  $region22: #{forward.1} parent=0 // pred_check
    _
  $region23: #{forward.1} parent=0 // pred_check_branch
    %330 = sbr.rel (0) target = $region25
  $region24: #{forward.1} parent=0 // pred_region
    _
  $region25: #{forward.1} parent=0 // pred_fallthru
    _

</llo_original>
